<compile_context>
chip_gen: v7x
topology: tpu7x:2x2x1
jax: 0.10.0
libtpu: 0.0.40
codegen_flags: <defaults>
</compile_context>

<pallas_src>
import jax
import jax.numpy as jnp
from jax.experimental import pallas as pl
from jax.experimental.pallas import tpu as pltpu

N_CENTROIDS = 12
N_LABELS = 3


def _round_up(n, m):
    return (n + m - 1) // m * m


def _rbfn_kernel(x_ref, wt_ref, b_ref, o_ref):
    # x_ref : (TB, N_CENTROIDS)        f32 VMEM  -- activation tile, batch-major
    # wt_ref: (N_CENTROIDS, N_LABELS)  f32 VMEM  -- resident (constant block idx)
    # b_ref : (1, N_LABELS)            f32 VMEM  -- resident
    # o_ref : (TB, N_LABELS)               VMEM  -- output tile
    acc = jnp.dot(x_ref[...], wt_ref[...], preferred_element_type=jnp.float32)
    o_ref[...] = (acc + b_ref[...]).astype(o_ref.dtype)


def rbfn_forward(x, weight, bias, *, block_b=4096):
    """out = x @ weight.T + bias  (torch.nn.Linear(N_CENTROIDS, N_LABELS) forward).

    x: (B, N_CENTROIDS) f32, weight: (N_LABELS, N_CENTROIDS) f32, bias: (N_LABELS,) f32.
    """
    B = x.shape[0]
    block_b = _round_up(block_b, 8)                       # sublane alignment
    tb = min(block_b, _round_up(max(B, 1), 128))          # batch tile
    b_pad = _round_up(B, tb)
    if b_pad != B:
        x = jnp.pad(x, ((0, b_pad - B), (0, 0)))          # garbage rows -> sliced off

    wt = weight.T.astype(jnp.float32)                     # (12, 3), one-off tiny op
    b2 = bias.reshape(1, N_LABELS).astype(jnp.float32)    # (1, 3)

    out = pl.pallas_call(
        _rbfn_kernel,
        out_shape=jax.ShapeDtypeStruct((b_pad, N_LABELS), x.dtype),
        grid_spec=pl.GridSpec(
            grid=(b_pad // tb,),
            in_specs=[
                pl.BlockSpec((tb, N_CENTROIDS), lambda i: (i, 0)),        # x tile
                pl.BlockSpec((N_CENTROIDS, N_LABELS), lambda i: (0, 0)),  # W^T (resident)
                pl.BlockSpec((1, N_LABELS), lambda i: (0, 0)),            # bias (resident)
            ],
            out_specs=pl.BlockSpec((tb, N_LABELS), lambda i: (i, 0)),     # out tile
        ),
        compiler_params=pltpu.CompilerParams(
            dimension_semantics=("parallel",)),   # shard batch tiles across TCs (v7x)
        cost_estimate=pl.CostEstimate(
            flops=2 * B * N_CENTROIDS * N_LABELS,
            transcendentals=0,
            bytes_accessed=4 * (B * N_CENTROIDS + B * N_LABELS
                                + N_CENTROIDS * N_LABELS + N_LABELS)),
    )(x, wt, b2)

    return out[:B]


if __name__ == "__main__":
    key = jax.random.PRNGKey(0)
    kx_small, kx_big, kw, kb = jax.random.split(key, 4)

    # Deterministic synthetic parameters (same shapes as nn.Linear(12, 3)).
    bound = 1.0 / (N_CENTROIDS ** 0.5)
    weight = jax.random.uniform(kw, (N_LABELS, N_CENTROIDS),
                                minval=-bound, maxval=bound, dtype=jnp.float32)
    bias = jax.random.uniform(kb, (N_LABELS,),
                              minval=-bound, maxval=bound, dtype=jnp.float32)

    # Small batch (single padded tile) and a larger batch that exercises
    # multiple grid steps plus a ragged tail.
    for bk, batch, blk in ((kx_small, 8, 4096), (kx_big, 1000, 256)):
        x = jax.random.normal(bk, (batch, N_CENTROIDS), dtype=jnp.float32)
        out = jax.block_until_ready(rbfn_forward(x, weight, bias, block_b=blk))

        ref = x @ weight.T + bias          # torch.nn.Linear semantics
        assert out.shape == (batch, N_LABELS)
        assert jnp.allclose(out, ref, atol=1e-5, rtol=1e-5)

    print("KERNEL_OK")
</pallas_src>

<mosaic_0001>
module attributes {stable_mosaic.version = 11 : i64} {
  func.func @_rbfn_kernel(%arg0: i32, %arg1: memref<128x12xf32, #tpu.memory_space<vmem>>, %arg2: memref<12x3xf32, #tpu.memory_space<vmem>>, %arg3: memref<1x3xf32, #tpu.memory_space<vmem>>, %arg4: memref<128x3xf32, #tpu.memory_space<vmem>>) attributes {dimension_semantics = [#tpu.dimension_semantics<parallel>], iteration_bounds = array<i64: 1>, scalar_prefetch = 0 : i64, scratch_operands = 0 : i64, tpu.core_type = #tpu.core_type<tc>, window_params = [{transform_indices = @transform_0, window_bounds = array<i64: 128, 12>}, {pipeline_mode = #tpu.pipeline_mode<synchronous>, transform_indices = @transform_1, window_bounds = array<i64: 12, 3>}, {pipeline_mode = #tpu.pipeline_mode<synchronous>, transform_indices = @transform_2, window_bounds = array<i64: 1, 3>}, {transform_indices = @transform_3, window_bounds = array<i64: 128, 3>}]} {
    %c0 = arith.constant 0 : index
    %c0_0 = arith.constant 0 : index
    %0 = vector.load %arg1[%c0, %c0_0] : memref<128x12xf32, #tpu.memory_space<vmem>>, vector<128x12xf32>
    %c0_1 = arith.constant 0 : index
    %c0_2 = arith.constant 0 : index
    %1 = vector.load %arg2[%c0_1, %c0_2] : memref<12x3xf32, #tpu.memory_space<vmem>>, vector<12x3xf32>
    %cst = arith.constant dense<0.000000e+00> : vector<128x3xf32>
    %2 = tpu.matmul %0, %1, %cst {dimension_numbers = #tpu.dot_dimension_numbers<[1], [0], [0], [1], [0, 0, 1, 1], [], []>} : vector<128x12xf32>, vector<12x3xf32>, vector<128x3xf32> -> vector<128x3xf32>
    %c0_3 = arith.constant 0 : index
    %c0_4 = arith.constant 0 : index
    %3 = vector.load %arg3[%c0_3, %c0_4] : memref<1x3xf32, #tpu.memory_space<vmem>>, vector<1x3xf32>
    %4 = vector.broadcast %3 : vector<1x3xf32> to vector<128x3xf32>
    %5 = arith.addf %2, %4 : vector<128x3xf32>
    %c0_5 = arith.constant 0 : index
    %c0_6 = arith.constant 0 : index
    %6 = vector.load %arg4[%c0_5, %c0_6] : memref<128x3xf32, #tpu.memory_space<vmem>>, vector<128x3xf32>
    tpu.vector_store %arg4[%c0_5, %c0_6], %5 {strides = array<i32>} : memref<128x3xf32, #tpu.memory_space<vmem>>, vector<128x3xf32>,
    return
  }
  func.func @transform_0(%arg0: i32) -> (i32, i32) {
    %c0_i32 = arith.constant 0 : i32
    %c0_i32_0 = arith.constant 0 : i32
    return %arg0, %c0_i32 : i32, i32
  }
  func.func @transform_1(%arg0: i32) -> (i32, i32) {
    %c0_i32 = arith.constant 0 : i32
    %c0_i32_0 = arith.constant 0 : i32
    %c0_i32_1 = arith.constant 0 : i32
    return %c0_i32, %c0_i32_0 : i32, i32
  }
  func.func @transform_2(%arg0: i32) -> (i32, i32) {
    %c0_i32 = arith.constant 0 : i32
    %c0_i32_0 = arith.constant 0 : i32
    %c0_i32_1 = arith.constant 0 : i32
    return %c0_i32, %c0_i32_0 : i32, i32
  }
  func.func @transform_3(%arg0: i32) -> (i32, i32) {
    %c0_i32 = arith.constant 0 : i32
    %c0_i32_0 = arith.constant 0 : i32
    return %arg0, %c0_i32 : i32, i32
  }
}

</mosaic_0001>

<llo_original>
// kernel: tpu_custom_call.1
$region0: #{tpu_custom_call.1}
  #allocation0 [shape = 'u32[]', space=smem, size = 0x4, offset = 0x4, fixed_abs, tag = 'smem constant byte address 0x4 - core index']
  #allocation1 [shape = 'u32[144,128]{1,0:T(1,128)}', space=vmem, size = 0x12000, scoped, tag = 'internal scratch']
  %s0 = inlined_call_operand.vmem [shape: f32[128,12], index: 0, kind: input, shape index: {}]
  %s1 = inlined_call_operand.vmem [shape: f32[12,3], index: 1, kind: input, shape index: {}]
  %s2 = inlined_call_operand.vmem [shape: f32[1,3], index: 2, kind: input, shape index: {}]
  %s3 = inlined_call_operand.vmem [shape: f32[128,3], index: 3, kind: output, shape index: {}]
  %s4 = sld [smem:[#allocation0]]
  $region22: #{tpu_custom_call.1} parent=0
    _
  %s6 = ssub.s32 1, %s4
  %s7 = scalar_select 0, %s6, %s4
  // Predicated region
  $region2: #{tpu_custom_call.1} parent=0 // pred_check
    _
  $region3: #{tpu_custom_call.1} parent=0 // pred_check_branch
    %9 = sbr.rel (0) target = $region5
  $region4: #{tpu_custom_call.1} parent=0 // pred_region
    _
  $region5: #{tpu_custom_call.1} parent=0 // pred_fallthru
    _
  // Predicated region
  $region6: #{tpu_custom_call.1} parent=0 // pred_check
    _
  $region7: #{tpu_custom_call.1} parent=0 // pred_check_branch
    %11 = sbr.rel (0) target = $region9
  $region8: #{tpu_custom_call.1} parent=0 // pred_region
    _
  $region9: #{tpu_custom_call.1} parent=0 // pred_fallthru
    _
  // Predicated region
  $region10: #{tpu_custom_call.1} parent=0 // pred_check
    _
  $region11: #{tpu_custom_call.1} parent=0 // pred_check_branch
    %13 = sbr.rel (0) target = $region13
  $region12: #{tpu_custom_call.1} parent=0 // pred_region
    _
  $region13: #{tpu_custom_call.1} parent=0 // pred_fallthru
    _
  %v14 = vld [vmem:[%s0] sm:$0xff]
  %v15 = vld [vmem:[%s0 + $0x8] sm:$0xff]
  %v16 = vld [vmem:[%s0 + $0x10] sm:$0xff]
  %v17 = vld [vmem:[%s0 + $0x18] sm:$0xff]
  %v18 = vld [vmem:[%s0 + $0x20] sm:$0xff]
  %v19 = vld [vmem:[%s0 + $0x28] sm:$0xff]
  %v20 = vld [vmem:[%s0 + $0x30] sm:$0xff]
  %v21 = vld [vmem:[%s0 + $0x38] sm:$0xff]
  %v22 = vld [vmem:[%s0 + $0x40] sm:$0xff]
  %v23 = vld [vmem:[%s0 + $0x48] sm:$0xff]
  %v24 = vld [vmem:[%s0 + $0x50] sm:$0xff]
  %v25 = vld [vmem:[%s0 + $0x58] sm:$0xff]
  %v26 = vld [vmem:[%s0 + $0x60] sm:$0xff]
  %v27 = vld [vmem:[%s0 + $0x68] sm:$0xff]
  %v28 = vld [vmem:[%s0 + $0x70] sm:$0xff]
  %v29 = vld [vmem:[%s0 + $0x78] sm:$0xff]
  %v30 = vld [vmem:[%s1] sm:$0xff]
  %v31 = vld [vmem:[%s1 + $0x8] sm:$0xf]
  %v32 = vld [vmem:[%s2] sm:$0x1]
  %v34 = vlaneseq
  %v35 = vshrl.u32 %v34, 7
  %v36 = vsub.s32 0, %v35
  %v37 = vrot.slane %v32, %v36
  %vm39 = vcmask 97280
  %v41 = vsel %vm39, %v14, 0
  %v44 = vsel %vm39, %v15, 0
  %v47 = vsel %vm39, %v16, 0
  %v50 = vsel %vm39, %v17, 0
  %v53 = vsel %vm39, %v18, 0
  %v56 = vsel %vm39, %v19, 0
  %v59 = vsel %vm39, %v20, 0
  %v62 = vsel %vm39, %v21, 0
  %v65 = vsel %vm39, %v22, 0
  %v68 = vsel %vm39, %v23, 0
  %v71 = vsel %vm39, %v24, 0
  %v74 = vsel %vm39, %v25, 0
  %v77 = vsel %vm39, %v26, 0
  %v80 = vsel %vm39, %v27, 0
  %v83 = vsel %vm39, %v28, 0
  %v86 = vsel %vm39, %v29, 0
  %vm88 = vcmask 1043456
  %v90 = vsel %vm88, %v31, 0
  %92 = vmatprep.subr.mxu0 0.0
  %93 = vmatpush1.msra.mxu0 %v30
  %94 = vmatprep.subr.mxu0 0.0
  %95 = vmatpush1.msra.mxu0 %v90
  %96 = vmatprep.subr.mxu0 0.0
  %97 = vmatpush1.msra.mxu0 0.0
  %98 = vmatprep.subr.mxu0 0.0
  %99 = vmatpush1.msra.mxu0 0.0
  %100 = vmatprep.subr.mxu0 0.0
  %101 = vmatpush1.msra.mxu0 0.0
  %102 = vmatprep.subr.mxu0 0.0
  %103 = vmatpush1.msra.mxu0 0.0
  %104 = vmatprep.subr.mxu0 0.0
  %105 = vmatpush1.msra.mxu0 0.0
  %106 = vmatprep.subr.mxu0 0.0
  %107 = vmatpush1.msra.mxu0 0.0
  %108 = vmatprep.subr.mxu0 0.0
  %109 = vmatpush1.msra.mxu0 0.0
  %110 = vmatprep.subr.mxu0 0.0
  %111 = vmatpush1.msra.mxu0 0.0
  %112 = vmatprep.subr.mxu0 0.0
  %113 = vmatpush1.msra.mxu0 0.0
  %114 = vmatprep.subr.mxu0 0.0
  %115 = vmatpush1.msra.mxu0 0.0
  %116 = vmatprep.subr.mxu0 0.0
  %117 = vmatpush1.msra.mxu0 0.0
  %118 = vmatprep.subr.mxu0 0.0
  %119 = vmatpush1.msra.mxu0 0.0
  %120 = vmatprep.subr.mxu0 0.0
  %121 = vmatpush1.msra.mxu0 0.0
  %122 = vmatprep.subr.mxu0 0.0
  %123 = vmatpush1.msra.mxu0 0.0
  %124 = vmatprep.subr.mxu0 0.0
  %125 = vmatpush1.msra.mxu0 0.0
  %126 = vmatprep.subr.mxu0 0.0
  %127 = vmatpush1.msra.mxu0 0.0
  %128 = vmatprep.subr.mxu0 0.0
  %129 = vmatpush1.msra.mxu0 0.0
  %130 = vmatprep.subr.mxu0 0.0
  %131 = vmatpush1.msra.mxu0 0.0
  %132 = vmatprep.subr.mxu0 0.0
  %133 = vmatpush1.msra.mxu0 0.0
  %134 = vmatprep.subr.mxu0 0.0
  %135 = vmatpush1.msra.mxu0 0.0
  %136 = vmatprep.subr.mxu0 0.0
  %137 = vmatpush1.msra.mxu0 0.0
  %138 = vmatprep.subr.mxu0 0.0
  %139 = vmatpush1.msra.mxu0 0.0
  %140 = vmatprep.subr.mxu0 0.0
  %141 = vmatpush1.msra.mxu0 0.0
  %142 = vmatprep.subr.mxu0 0.0
  %143 = vmatpush1.msra.mxu0 0.0
  %144 = vmatprep.subr.mxu0 0.0
  %145 = vmatpush1.msra.mxu0 0.0
  %146 = vmatprep.subr.mxu0 0.0
  %147 = vmatpush1.msra.mxu0 0.0
  %148 = vmatprep.subr.mxu0 0.0
  %149 = vmatpush1.msra.mxu0 0.0
  %150 = vmatprep.subr.mxu0 0.0
  %151 = vmatpush1.msra.mxu0 0.0
  %152 = vmatprep.subr.mxu0 0.0
  %153 = vmatpush1.msra.mxu0 0.0
  %154 = vmatprep.subr.mxu0 0.0
  %155 = vmatpush1.msra.mxu0 0.0
  %156 = vmatprep.mubr.f32.mxu0 0.0
  %157 = vmatmul.mubr.f32.gmra.mrb[0].mxu0 %v41
  %v158 = vpop.f32.mrb[0].mxu0
  %v159 = vadd.f32 %v37, %v158
  %v160 = vpop.f32.mrb[0].mxu0
  %161 = vmatprep.mubr.f32.mxu0 0.0
  %162 = vmatmul.mubr.f32.gmra.mrb[0].mxu0 %v44
  %v163 = vpop.f32.mrb[0].mxu0
  %v164 = vadd.f32 %v37, %v163
  %v165 = vpop.f32.mrb[0].mxu0
  %166 = vmatprep.mubr.f32.mxu0 0.0
  %167 = vmatmul.mubr.f32.gmra.mrb[0].mxu0 %v47
  %v168 = vpop.f32.mrb[0].mxu0
  %v169 = vadd.f32 %v37, %v168
  %v170 = vpop.f32.mrb[0].mxu0
  %171 = vmatprep.mubr.f32.mxu0 0.0
  %172 = vmatmul.mubr.f32.gmra.mrb[0].mxu0 %v50
  %v173 = vpop.f32.mrb[0].mxu0
  %v174 = vadd.f32 %v37, %v173
  %v175 = vpop.f32.mrb[0].mxu0
  %176 = vmatprep.mubr.f32.mxu0 0.0
  %177 = vmatmul.mubr.f32.gmra.mrb[0].mxu0 %v53
  %v178 = vpop.f32.mrb[0].mxu0
  %v179 = vadd.f32 %v37, %v178
  %v180 = vpop.f32.mrb[0].mxu0
  %181 = vmatprep.mubr.f32.mxu0 0.0
  %182 = vmatmul.mubr.f32.gmra.mrb[0].mxu0 %v56
  %v183 = vpop.f32.mrb[0].mxu0
  %v184 = vadd.f32 %v37, %v183
  %v185 = vpop.f32.mrb[0].mxu0
  %186 = vmatprep.mubr.f32.mxu0 0.0
  %187 = vmatmul.mubr.f32.gmra.mrb[0].mxu0 %v59
  %v188 = vpop.f32.mrb[0].mxu0
  %v189 = vadd.f32 %v37, %v188
  %v190 = vpop.f32.mrb[0].mxu0
  %191 = vmatprep.mubr.f32.mxu0 0.0
  %192 = vmatmul.mubr.f32.gmra.mrb[0].mxu0 %v62
  %v193 = vpop.f32.mrb[0].mxu0
  %v194 = vadd.f32 %v37, %v193
  %v195 = vpop.f32.mrb[0].mxu0
  %196 = vmatprep.mubr.f32.mxu0 0.0
  %197 = vmatmul.mubr.f32.gmra.mrb[0].mxu0 %v65
  %v198 = vpop.f32.mrb[0].mxu0
  %v199 = vadd.f32 %v37, %v198
  %v200 = vpop.f32.mrb[0].mxu0
  %201 = vmatprep.mubr.f32.mxu0 0.0
  %202 = vmatmul.mubr.f32.gmra.mrb[0].mxu0 %v68
  %v203 = vpop.f32.mrb[0].mxu0
  %v204 = vadd.f32 %v37, %v203
  %v205 = vpop.f32.mrb[0].mxu0
  %206 = vmatprep.mubr.f32.mxu0 0.0
  %207 = vmatmul.mubr.f32.gmra.mrb[0].mxu0 %v71
  %v208 = vpop.f32.mrb[0].mxu0
  %v209 = vadd.f32 %v37, %v208
  %v210 = vpop.f32.mrb[0].mxu0
  %211 = vmatprep.mubr.f32.mxu0 0.0
  %212 = vmatmul.mubr.f32.gmra.mrb[0].mxu0 %v74
  %v213 = vpop.f32.mrb[0].mxu0
  %v214 = vadd.f32 %v37, %v213
  %v215 = vpop.f32.mrb[0].mxu0
  %216 = vmatprep.mubr.f32.mxu0 0.0
  %217 = vmatmul.mubr.f32.gmra.mrb[0].mxu0 %v77
  %v218 = vpop.f32.mrb[0].mxu0
  %v219 = vadd.f32 %v37, %v218
  %v220 = vpop.f32.mrb[0].mxu0
  %221 = vmatprep.mubr.f32.mxu0 0.0
  %222 = vmatmul.mubr.f32.gmra.mrb[0].mxu0 %v80
  %v223 = vpop.f32.mrb[0].mxu0
  %v224 = vadd.f32 %v37, %v223
  %v225 = vpop.f32.mrb[0].mxu0
  %226 = vmatprep.mubr.f32.mxu0 0.0
  %227 = vmatmul.mubr.f32.gmra.mrb[0].mxu0 %v83
  %v228 = vpop.f32.mrb[0].mxu0
  %v229 = vadd.f32 %v37, %v228
  %v230 = vpop.f32.mrb[0].mxu0
  %231 = vmatprep.mubr.f32.mxu0 0.0
  %232 = vmatmul.mubr.f32.gmra.mrb[0].mxu0 %v86
  %v233 = vpop.f32.mrb[0].mxu0
  %v234 = vadd.f32 %v37, %v233
  %v235 = vpop.f32.mrb[0].mxu0
  %236 = vdwg.mxu0
  %vm237 = vcmask 23552
  %238 = vst.msk [vmem:[%s3] sm:$0xff] %vm237, %v159
  %239 = vst.msk [vmem:[%s3 + $0x8] sm:$0xff] %vm237, %v164
  %240 = vst.msk [vmem:[%s3 + $0x10] sm:$0xff] %vm237, %v169
  %241 = vst.msk [vmem:[%s3 + $0x18] sm:$0xff] %vm237, %v174
  %242 = vst.msk [vmem:[%s3 + $0x20] sm:$0xff] %vm237, %v179
  %243 = vst.msk [vmem:[%s3 + $0x28] sm:$0xff] %vm237, %v184
  %244 = vst.msk [vmem:[%s3 + $0x30] sm:$0xff] %vm237, %v189
  %245 = vst.msk [vmem:[%s3 + $0x38] sm:$0xff] %vm237, %v194
  %246 = vst.msk [vmem:[%s3 + $0x40] sm:$0xff] %vm237, %v199
  %247 = vst.msk [vmem:[%s3 + $0x48] sm:$0xff] %vm237, %v204
  %248 = vst.msk [vmem:[%s3 + $0x50] sm:$0xff] %vm237, %v209
  %249 = vst.msk [vmem:[%s3 + $0x58] sm:$0xff] %vm237, %v214
  %250 = vst.msk [vmem:[%s3 + $0x60] sm:$0xff] %vm237, %v219
  %251 = vst.msk [vmem:[%s3 + $0x68] sm:$0xff] %vm237, %v224
  %252 = vst.msk [vmem:[%s3 + $0x70] sm:$0xff] %vm237, %v229
  %253 = vst.msk [vmem:[%s3 + $0x78] sm:$0xff] %vm237, %v234
  // Predicated region
  $region14: #{tpu_custom_call.1} parent=0 // pred_check
    _
  $region15: #{tpu_custom_call.1} parent=0 // pred_check_branch
    %255 = sbr.rel (0) target = $region17
  $region16: #{tpu_custom_call.1} parent=0 // pred_region
    _
  $region17: #{tpu_custom_call.1} parent=0 // pred_fallthru
    _
  // Predicated region
  $region18: #{tpu_custom_call.1} parent=0 // pred_check
    _
  $region19: #{tpu_custom_call.1} parent=0 // pred_check_branch
    %257 = sbr.rel (0) target = $region21
  $region20: #{tpu_custom_call.1} parent=0 // pred_region
    _
  $region21: #{tpu_custom_call.1} parent=0 // pred_fallthru
    _

</llo_original>
